<compile_context>
chip_gen: v7x
topology: tpu7x:2x2x1
jax: 0.10.0
libtpu: 0.0.40
codegen_flags: <defaults>
</compile_context>

<pallas_src>
import functools
import math

import jax
import jax.numpy as jnp
from jax import lax
from jax.experimental import pallas as pl
from jax.experimental.pallas import tpu as pltpu


def _reorder_ifog(w, H):
    """Rows are in PyTorch LSTM gate order (i,f,g,o); reorder to (i,f,o,g)."""
    return jnp.concatenate([w[0:2 * H], w[3 * H:4 * H], w[2 * H:3 * H]], axis=0)


# -----------------------------------------------------------------------------
# Pallas kernel
# -----------------------------------------------------------------------------
def _make_generator_kernel(num_layers, hidden_size, output_size):
    H = hidden_size
    L = num_layers

    def kernel(*refs):
        # refs: x, [W_ih_0, W_hh_0, b_0, ...], fc_w, fc_b, out,
        #       gates_scratch, seq_scratch, h_carry, c_carry
        x_ref = refs[0]
        layer_refs = refs[1:1 + 3 * L]
        fc_w_ref = refs[1 + 3 * L]
        fc_b_ref = refs[2 + 3 * L]
        o_ref = refs[3 + 3 * L]
        gates_ref = refs[4 + 3 * L]     # (Tc, B, 4H)
        seq_ref = refs[5 + 3 * L]       # (Tc, B, H)
        h_ref = refs[6 + 3 * L]         # (L, B, H)  persists across grid steps
        c_ref = refs[7 + 3 * L]         # (L, B, H)

        Tc = x_ref.shape[0]

        @pl.when(pl.program_id(0) == 0)
        def _():
            h_ref[...] = jnp.zeros_like(h_ref)
            c_ref[...] = jnp.zeros_like(c_ref)

        for l in range(L):
            w_ih = layer_refs[3 * l][...]       # (D_l, 4H) pre-transposed
            w_hh = layer_refs[3 * l + 1][...]   # (H,  4H) pre-transposed
            b = layer_refs[3 * l + 2][...]      # (1, 4H)  = b_ih + b_hh

            inp_seq = x_ref[...] if l == 0 else seq_ref[...]
            # Whole-chunk input projection: one MXU GEMM (M = Tc*B).
            proj = lax.dot_general(
                inp_seq, w_ih,
                dimension_numbers=(((2,), (0,)), ((), ())),
                preferred_element_type=jnp.float32,
            )
            gates_ref[...] = proj + b           # bias added once per chunk

            def step(t, carry, w_hh=w_hh):
                h, c = carry                    # (B, H) each, vreg-resident
                g = gates_ref[t] + jnp.dot(
                    h, w_hh, preferred_element_type=jnp.float32)  # (B, 4H)
                ifo = jax.nn.sigmoid(g[:, 0:3 * H])   # fused i,f,o sigmoid
                gg = jnp.tanh(g[:, 3 * H:4 * H])
                i_g = ifo[:, 0:H]
                f_g = ifo[:, H:2 * H]
                o_g = ifo[:, 2 * H:3 * H]
                c_new = f_g * c + i_g * gg
                h_new = o_g * jnp.tanh(c_new)
                seq_ref[t] = h_new
                return (h_new, c_new)

            h_fin, c_fin = lax.fori_loop(0, Tc, step, (h_ref[l], c_ref[l]))
            h_ref[l] = h_fin
            c_ref[l] = c_fin

        # FC over the whole chunk in one GEMM.
        fc_out = lax.dot_general(
            seq_ref[...], fc_w_ref[...],
            dimension_numbers=(((2,), (0,)), ((), ())),
            preferred_element_type=jnp.float32,
        ) + fc_b_ref[...]
        o_ref[...] = fc_out

    return kernel


# -----------------------------------------------------------------------------
# Wrapper
# -----------------------------------------------------------------------------
def generator_forward(x, params, *, num_layers, hidden_size, output_size,
                      t_chunk=128):
    """x: (B, T, input_size) float32 -> (B, T, output_size + 1)."""
    x = x.astype(jnp.float32)
    B, T, D = x.shape
    H, O, L = hidden_size, output_size, num_layers

    B_pad = ((B + 7) // 8) * 8          # sublane alignment
    Tc = min(t_chunk, T)
    n_chunks = -(-T // Tc)
    T_pad = n_chunks * Tc

    # Time-major + pad. Padded batch rows / trailing timesteps are computed but
    # independent of (and discarded from) the real outputs.
    x_tm = jnp.transpose(x, (1, 0, 2))
    x_tm = jnp.pad(x_tm, ((0, T_pad - T), (0, B_pad - B), (0, 0)))

    kernel_inputs = [x_tm]
    in_specs = [pl.BlockSpec((Tc, B_pad, D), lambda i: (i, 0, 0))]
    for l in range(L):
        w_ih, w_hh, b_ih, b_hh = params[f"lstm_l{l}"]
        d_l = D if l == 0 else H
        kernel_inputs.append(_reorder_ifog(w_ih, H).T)                  # (D_l,4H)
        kernel_inputs.append(_reorder_ifog(w_hh, H).T)                  # (H,4H)
        kernel_inputs.append(_reorder_ifog(b_ih + b_hh, H).reshape(1, 4 * H))
        in_specs += [
            pl.BlockSpec((d_l, 4 * H), lambda i: (0, 0)),
            pl.BlockSpec((H, 4 * H), lambda i: (0, 0)),
            pl.BlockSpec((1, 4 * H), lambda i: (0, 0)),
        ]
    fc_w, fc_b = params["fc"]
    kernel_inputs.append(fc_w.T)                                        # (H,O)
    kernel_inputs.append(fc_b.reshape(1, O))
    in_specs += [pl.BlockSpec((H, O), lambda i: (0, 0)),
                 pl.BlockSpec((1, O), lambda i: (0, 0))]

    # Advisory cost estimate for XLA scheduling.
    flops = 2 * T_pad * B_pad * H * O
    for l in range(L):
        d_l = D if l == 0 else H
        flops += 2 * T_pad * B_pad * 4 * H * (d_l + H)
    transcendentals = 5 * T_pad * L * B_pad * H
    bytes_accessed = 4 * (int(x_tm.size) + T_pad * B_pad * O
                          + sum(int(a.size) for a in kernel_inputs[1:]))

    kernel = _make_generator_kernel(L, H, O)
    out_tm = pl.pallas_call(
        kernel,
        out_shape=jax.ShapeDtypeStruct((T_pad, B_pad, O), jnp.float32),
        grid_spec=pltpu.PrefetchScalarGridSpec(
            num_scalar_prefetch=0,
            grid=(n_chunks,),
            in_specs=in_specs,
            out_specs=pl.BlockSpec((Tc, B_pad, O), lambda i: (i, 0, 0)),
            scratch_shapes=[
                pltpu.VMEM((Tc, B_pad, 4 * H), jnp.float32),   # gate precompute
                pltpu.VMEM((Tc, B_pad, H), jnp.float32),       # layer output seq
                pltpu.VMEM((L, B_pad, H), jnp.float32),        # h carry
                pltpu.VMEM((L, B_pad, H), jnp.float32),        # c carry
            ]),
        compiler_params=pltpu.CompilerParams(
            dimension_semantics=("arbitrary",)),
        cost_estimate=pl.CostEstimate(
            flops=flops, transcendentals=transcendentals,
            bytes_accessed=bytes_accessed),
    )(*kernel_inputs)

    out = jnp.transpose(out_tm[:T, :B], (1, 0, 2))      # (B, T, O)
    pitch = x[:, :, -1:]                                # concat outside kernel
    return jnp.concatenate([out, pitch], axis=-1)


# -----------------------------------------------------------------------------
# Deterministic PyTorch-style init
# -----------------------------------------------------------------------------
def init_params(key, input_size, hidden_size, num_layers, output_size):
    k = 1.0 / math.sqrt(hidden_size)
    params = {}
    for l in range(num_layers):
        d_in = input_size if l == 0 else hidden_size
        key, k1, k2, k3, k4 = jax.random.split(key, 5)
        w_ih = jax.random.uniform(k1, (4 * hidden_size, d_in), jnp.float32, -k, k)
        w_hh = jax.random.uniform(k2, (4 * hidden_size, hidden_size), jnp.float32, -k, k)
        b_ih = jax.random.uniform(k3, (4 * hidden_size,), jnp.float32, -k, k)
        b_hh = jax.random.uniform(k4, (4 * hidden_size,), jnp.float32, -k, k)
        params[f"lstm_l{l}"] = (w_ih, w_hh, b_ih, b_hh)
    key, k1, k2 = jax.random.split(key, 3)
    fc_w = jax.random.uniform(k1, (output_size, hidden_size), jnp.float32, -k, k)
    fc_b = jax.random.uniform(k2, (output_size,), jnp.float32, -k, k)
    params["fc"] = (fc_w, fc_b)
    return params


# -----------------------------------------------------------------------------
# Pure-JAX reference (mirrors torch.nn.LSTM + Linear + concat)
# -----------------------------------------------------------------------------
def reference_forward(x, params, *, num_layers, hidden_size, output_size):
    x = x.astype(jnp.float32)
    B, T, _ = x.shape
    H = hidden_size

    def run_layer(inp, w_ih, w_hh, b_ih, b_hh):
        def step(carry, x_t):
            h, c = carry
            gates = x_t @ w_ih.T + h @ w_hh.T + b_ih + b_hh
            i = jax.nn.sigmoid(gates[:, 0 * H:1 * H])
            f = jax.nn.sigmoid(gates[:, 1 * H:2 * H])
            g = jnp.tanh(gates[:, 2 * H:3 * H])
            o = jax.nn.sigmoid(gates[:, 3 * H:4 * H])
            c = f * c + i * g
            h = o * jnp.tanh(c)
            return (h, c), h

        init = (jnp.zeros((B, H), jnp.float32), jnp.zeros((B, H), jnp.float32))
        _, ys = lax.scan(step, init, jnp.swapaxes(inp, 0, 1))
        return jnp.swapaxes(ys, 0, 1)

    out = x
    for l in range(num_layers):
        out = run_layer(out, *params[f"lstm_l{l}"])
    fc_w, fc_b = params["fc"]
    out = out @ fc_w.T + fc_b
    pitch = x[:, :, -1:]
    return jnp.concatenate([out, pitch], axis=-1)


if __name__ == "__main__":
    input_size, hidden_size, num_layers, output_size = 4, 32, 2, 3
    B, T = 2, 8

    key = jax.random.PRNGKey(0)
    pkey, xkey = jax.random.split(key)
    params = init_params(pkey, input_size, hidden_size, num_layers, output_size)
    x = jax.random.normal(xkey, (B, T, input_size), jnp.float32)

    fwd = functools.partial(
        generator_forward,
        num_layers=num_layers,
        hidden_size=hidden_size,
        output_size=output_size,
    )
    out = jax.jit(fwd)(x, params)
    out = jax.block_until_ready(out)

    ref = reference_forward(
        x, params,
        num_layers=num_layers, hidden_size=hidden_size, output_size=output_size,
    )

    assert out.shape == (B, T, output_size + 1), out.shape
    assert jnp.allclose(out, ref, atol=1e-4, rtol=1e-4), float(
        jnp.max(jnp.abs(out - ref)))

    print("KERNEL_OK")
</pallas_src>

<mosaic_0001>
module attributes {stable_mosaic.version = 11 : i64} {
  func.func @kernel(%arg0: i32, %arg1: memref<8x8x4xf32, #tpu.memory_space<vmem>>, %arg2: memref<4x128xf32, #tpu.memory_space<vmem>>, %arg3: memref<32x128xf32, #tpu.memory_space<vmem>>, %arg4: memref<1x128xf32, #tpu.memory_space<vmem>>, %arg5: memref<32x128xf32, #tpu.memory_space<vmem>>, %arg6: memref<32x128xf32, #tpu.memory_space<vmem>>, %arg7: memref<1x128xf32, #tpu.memory_space<vmem>>, %arg8: memref<32x3xf32, #tpu.memory_space<vmem>>, %arg9: memref<1x3xf32, #tpu.memory_space<vmem>>, %arg10: memref<8x8x3xf32, #tpu.memory_space<vmem>>, %arg11: memref<8x8x128xf32, #tpu.memory_space<vmem>>, %arg12: memref<8x8x32xf32, #tpu.memory_space<vmem>>, %arg13: memref<2x8x32xf32, #tpu.memory_space<vmem>>, %arg14: memref<2x8x32xf32, #tpu.memory_space<vmem>>) attributes {dimension_semantics = [#tpu.dimension_semantics<arbitrary>], iteration_bounds = array<i64: 1>, scalar_prefetch = 0 : i64, scratch_operands = 4 : i64, tpu.core_type = #tpu.core_type<tc>, window_params = [{transform_indices = @transform_0, window_bounds = array<i64: 8, 8, 4>}, {pipeline_mode = #tpu.pipeline_mode<synchronous>, transform_indices = @transform_1, window_bounds = array<i64: 4, 128>}, {pipeline_mode = #tpu.pipeline_mode<synchronous>, transform_indices = @transform_2, window_bounds = array<i64: 32, 128>}, {pipeline_mode = #tpu.pipeline_mode<synchronous>, transform_indices = @transform_3, window_bounds = array<i64: 1, 128>}, {pipeline_mode = #tpu.pipeline_mode<synchronous>, transform_indices = @transform_4, window_bounds = array<i64: 32, 128>}, {pipeline_mode = #tpu.pipeline_mode<synchronous>, transform_indices = @transform_5, window_bounds = array<i64: 32, 128>}, {pipeline_mode = #tpu.pipeline_mode<synchronous>, transform_indices = @transform_6, window_bounds = array<i64: 1, 128>}, {pipeline_mode = #tpu.pipeline_mode<synchronous>, transform_indices = @transform_7, window_bounds = array<i64: 32, 3>}, {pipeline_mode = #tpu.pipeline_mode<synchronous>, transform_indices = @transform_8, window_bounds = array<i64: 1, 3>}, {transform_indices = @transform_9, window_bounds = array<i64: 8, 8, 3>}]} {
    %c0_i32 = arith.constant 0 : i32
    %0 = arith.cmpi eq, %arg0, %c0_i32 : i32
    %1 = arith.extui %0 : i1 to i32
    %c0_i32_0 = arith.constant 0 : i32
    %2 = arith.cmpi ne, %1, %c0_i32_0 : i32
    scf.if %2 {
      %cst_65 = arith.constant 0.000000e+00 : f32
      %53 = vector.broadcast %cst_65 : f32 to vector<2x8x32xf32>
      %c0_66 = arith.constant 0 : index
      %c0_67 = arith.constant 0 : index
      %c0_68 = arith.constant 0 : index
      %54 = vector.load %arg13[%c0_66, %c0_67, %c0_68] : memref<2x8x32xf32, #tpu.memory_space<vmem>>, vector<2x8x32xf32>
      tpu.vector_store %arg13[%c0_66, %c0_67, %c0_68], %53 {strides = array<i32>} : memref<2x8x32xf32, #tpu.memory_space<vmem>>, vector<2x8x32xf32>,
      %cst_69 = arith.constant 0.000000e+00 : f32
      %55 = vector.broadcast %cst_69 : f32 to vector<2x8x32xf32>
      %c0_70 = arith.constant 0 : index
      %c0_71 = arith.constant 0 : index
      %c0_72 = arith.constant 0 : index
      %56 = vector.load %arg14[%c0_70, %c0_71, %c0_72] : memref<2x8x32xf32, #tpu.memory_space<vmem>>, vector<2x8x32xf32>
      tpu.vector_store %arg14[%c0_70, %c0_71, %c0_72], %55 {strides = array<i32>} : memref<2x8x32xf32, #tpu.memory_space<vmem>>, vector<2x8x32xf32>,
    } else {
    }
    %c0 = arith.constant 0 : index
    %c0_1 = arith.constant 0 : index
    %3 = vector.load %arg2[%c0, %c0_1] : memref<4x128xf32, #tpu.memory_space<vmem>>, vector<4x128xf32>
    %c0_2 = arith.constant 0 : index
    %c0_3 = arith.constant 0 : index
    %4 = vector.load %arg3[%c0_2, %c0_3] : memref<32x128xf32, #tpu.memory_space<vmem>>, vector<32x128xf32>
    %c0_4 = arith.constant 0 : index
    %c0_5 = arith.constant 0 : index
    %5 = vector.load %arg4[%c0_4, %c0_5] : memref<1x128xf32, #tpu.memory_space<vmem>>, vector<1x128xf32>
    %c0_6 = arith.constant 0 : index
    %c0_7 = arith.constant 0 : index
    %c0_8 = arith.constant 0 : index
    %6 = vector.load %arg1[%c0_6, %c0_7, %c0_8] : memref<8x8x4xf32, #tpu.memory_space<vmem>>, vector<8x8x4xf32>
    %cst = arith.constant dense<0.000000e+00> : vector<8x8x128xf32>
    %7 = tpu.matmul %6, %3, %cst {dimension_numbers = #tpu.dot_dimension_numbers<[2], [0], [0, 1], [1], [0, 0, 0, 1, 1, 1], [], []>} : vector<8x8x4xf32>, vector<4x128xf32>, vector<8x8x128xf32> -> vector<8x8x128xf32>
    %8 = vector.shape_cast %5 : vector<1x128xf32> to vector<1x1x128xf32>
    %9 = vector.broadcast %8 : vector<1x1x128xf32> to vector<8x8x128xf32>
    %10 = arith.addf %7, %9 : vector<8x8x128xf32>
    %c0_9 = arith.constant 0 : index
    %c0_10 = arith.constant 0 : index
    %c0_11 = arith.constant 0 : index
    %11 = vector.load %arg11[%c0_9, %c0_10, %c0_11] : memref<8x8x128xf32, #tpu.memory_space<vmem>>, vector<8x8x128xf32>
    tpu.vector_store %arg11[%c0_9, %c0_10, %c0_11], %10 {strides = array<i32>} : memref<8x8x128xf32, #tpu.memory_space<vmem>>, vector<8x8x128xf32>,
    %c0_12 = arith.constant 0 : index
    %c0_13 = arith.constant 0 : index
    %c0_14 = arith.constant 0 : index
    %12 = vector.load %arg13[%c0_12, %c0_13, %c0_14] : memref<2x8x32xf32, #tpu.memory_space<vmem>>, vector<1x8x32xf32>
    %13 = vector.shape_cast %12 : vector<1x8x32xf32> to vector<8x32xf32>
    %c0_15 = arith.constant 0 : index
    %c0_16 = arith.constant 0 : index
    %c0_17 = arith.constant 0 : index
    %14 = vector.load %arg14[%c0_15, %c0_16, %c0_17] : memref<2x8x32xf32, #tpu.memory_space<vmem>>, vector<1x8x32xf32>
    %15 = vector.shape_cast %14 : vector<1x8x32xf32> to vector<8x32xf32>
    %c0_i32_18 = arith.constant 0 : i32
    %c8_i32 = arith.constant 8 : i32
    %16 = arith.addi %c0_i32_18, %c8_i32 : i32
    %c1_i32 = arith.constant 1 : i32
    %17:2 = scf.for %arg15 = %c0_i32_18 to %16 step %c1_i32 iter_args(%arg16 = %13, %arg17 = %15) -> (vector<8x32xf32>, vector<8x32xf32>)  : i32 {
      %53 = arith.index_cast %arg15 : i32 to index
      %c0_65 = arith.constant 0 : index
      %c0_66 = arith.constant 0 : index
      %54 = vector.load %arg11[%53, %c0_65, %c0_66] : memref<8x8x128xf32, #tpu.memory_space<vmem>>, vector<1x8x128xf32>
      %55 = vector.shape_cast %54 : vector<1x8x128xf32> to vector<8x128xf32>
      %cst_67 = arith.constant dense<0.000000e+00> : vector<8x128xf32>
      %56 = tpu.matmul %arg16, %4, %cst_67 {dimension_numbers = #tpu.dot_dimension_numbers<[1], [0], [0], [1], [0, 0, 1, 1], [], []>} : vector<8x32xf32>, vector<32x128xf32>, vector<8x128xf32> -> vector<8x128xf32>
      %57 = arith.addf %55, %56 : vector<8x128xf32>
      %58 = vector.extract_strided_slice %57 {offsets = [0, 0], sizes = [8, 96], strides = [1, 1]} : vector<8x128xf32> to vector<8x96xf32>
      %59 = arith.negf %58 : vector<8x96xf32>
      %60 = math.exp %59 : vector<8x96xf32>
      %cst_68 = arith.constant 1.000000e+00 : f32
      %61 = vector.broadcast %cst_68 : f32 to vector<8x96xf32>
      %62 = arith.addf %61, %60 : vector<8x96xf32>
      %63 = arith.divf %61, %62 : vector<8x96xf32>
      %64 = vector.extract_strided_slice %57 {offsets = [0, 96], sizes = [8, 32], strides = [1, 1]} : vector<8x128xf32> to vector<8x32xf32>
      %65 = math.tanh %64 : vector<8x32xf32>
      %66 = vector.extract_strided_slice %63 {offsets = [0, 0], sizes = [8, 32], strides = [1, 1]} : vector<8x96xf32> to vector<8x32xf32>
      %67 = vector.extract_strided_slice %63 {offsets = [0, 32], sizes = [8, 32], strides = [1, 1]} : vector<8x96xf32> to vector<8x32xf32>
      %68 = vector.extract_strided_slice %63 {offsets = [0, 64], sizes = [8, 32], strides = [1, 1]} : vector<8x96xf32> to vector<8x32xf32>
      %69 = arith.mulf %67, %arg17 : vector<8x32xf32>
      %70 = arith.mulf %66, %65 : vector<8x32xf32>
      %71 = arith.addf %69, %70 : vector<8x32xf32>
      %72 = math.tanh %71 : vector<8x32xf32>
      %73 = arith.mulf %68, %72 : vector<8x32xf32>
      %74 = arith.index_cast %arg15 : i32 to index
      %c0_69 = arith.constant 0 : index
      %c0_70 = arith.constant 0 : index
      %75 = vector.load %arg12[%74, %c0_69, %c0_70] : memref<8x8x32xf32, #tpu.memory_space<vmem>>, vector<1x8x32xf32>
      %76 = vector.shape_cast %75 : vector<1x8x32xf32> to vector<8x32xf32>
      %77 = vector.shape_cast %73 : vector<8x32xf32> to vector<1x8x32xf32>
      tpu.vector_store %arg12[%74, %c0_69, %c0_70], %77 {strides = array<i32>} : memref<8x8x32xf32, #tpu.memory_space<vmem>>, vector<1x8x32xf32>,
      scf.yield %73, %71 : vector<8x32xf32>, vector<8x32xf32>
    }
    %c8_i32_19 = arith.constant 8 : i32
    %c0_20 = arith.constant 0 : index
    %c0_21 = arith.constant 0 : index
    %c0_22 = arith.constant 0 : index
    %18 = vector.load %arg13[%c0_20, %c0_21, %c0_22] : memref<2x8x32xf32, #tpu.memory_space<vmem>>, vector<1x8x32xf32>
    %19 = vector.shape_cast %18 : vector<1x8x32xf32> to vector<8x32xf32>
    %20 = vector.shape_cast %17#0 : vector<8x32xf32> to vector<1x8x32xf32>
    tpu.vector_store %arg13[%c0_20, %c0_21, %c0_22], %20 {strides = array<i32>} : memref<2x8x32xf32, #tpu.memory_space<vmem>>, vector<1x8x32xf32>,
    %c0_23 = arith.constant 0 : index
    %c0_24 = arith.constant 0 : index
    %c0_25 = arith.constant 0 : index
    %21 = vector.load %arg14[%c0_23, %c0_24, %c0_25] : memref<2x8x32xf32, #tpu.memory_space<vmem>>, vector<1x8x32xf32>
    %22 = vector.shape_cast %21 : vector<1x8x32xf32> to vector<8x32xf32>
    %23 = vector.shape_cast %17#1 : vector<8x32xf32> to vector<1x8x32xf32>
    tpu.vector_store %arg14[%c0_23, %c0_24, %c0_25], %23 {strides = array<i32>} : memref<2x8x32xf32, #tpu.memory_space<vmem>>, vector<1x8x32xf32>,
    %c0_26 = arith.constant 0 : index
    %c0_27 = arith.constant 0 : index
    %24 = vector.load %arg5[%c0_26, %c0_27] : memref<32x128xf32, #tpu.memory_space<vmem>>, vector<32x128xf32>
    %c0_28 = arith.constant 0 : index
    %c0_29 = arith.constant 0 : index
    %25 = vector.load %arg6[%c0_28, %c0_29] : memref<32x128xf32, #tpu.memory_space<vmem>>, vector<32x128xf32>
    %c0_30 = arith.constant 0 : index
    %c0_31 = arith.constant 0 : index
    %26 = vector.load %arg7[%c0_30, %c0_31] : memref<1x128xf32, #tpu.memory_space<vmem>>, vector<1x128xf32>
    %c0_32 = arith.constant 0 : index
    %c0_33 = arith.constant 0 : index
    %c0_34 = arith.constant 0 : index
    %27 = vector.load %arg12[%c0_32, %c0_33, %c0_34] : memref<8x8x32xf32, #tpu.memory_space<vmem>>, vector<8x8x32xf32>
    %cst_35 = arith.constant dense<0.000000e+00> : vector<8x8x128xf32>
    %28 = tpu.matmul %27, %24, %cst_35 {dimension_numbers = #tpu.dot_dimension_numbers<[2], [0], [0, 1], [1], [0, 0, 0, 1, 1, 1], [], []>} : vector<8x8x32xf32>, vector<32x128xf32>, vector<8x8x128xf32> -> vector<8x8x128xf32>
    %29 = vector.shape_cast %26 : vector<1x128xf32> to vector<1x1x128xf32>
    %30 = vector.broadcast %29 : vector<1x1x128xf32> to vector<8x8x128xf32>
    %31 = arith.addf %28, %30 : vector<8x8x128xf32>
    %c0_36 = arith.constant 0 : index
    %c0_37 = arith.constant 0 : index
    %c0_38 = arith.constant 0 : index
    %32 = vector.load %arg11[%c0_36, %c0_37, %c0_38] : memref<8x8x128xf32, #tpu.memory_space<vmem>>, vector<8x8x128xf32>
    tpu.vector_store %arg11[%c0_36, %c0_37, %c0_38], %31 {strides = array<i32>} : memref<8x8x128xf32, #tpu.memory_space<vmem>>, vector<8x8x128xf32>,
    %c1 = arith.constant 1 : index
    %c0_39 = arith.constant 0 : index
    %c0_40 = arith.constant 0 : index
    %33 = vector.load %arg13[%c1, %c0_39, %c0_40] : memref<2x8x32xf32, #tpu.memory_space<vmem>>, vector<1x8x32xf32>
    %34 = vector.shape_cast %33 : vector<1x8x32xf32> to vector<8x32xf32>
    %c1_41 = arith.constant 1 : index
    %c0_42 = arith.constant 0 : index
    %c0_43 = arith.constant 0 : index
    %35 = vector.load %arg14[%c1_41, %c0_42, %c0_43] : memref<2x8x32xf32, #tpu.memory_space<vmem>>, vector<1x8x32xf32>
    %36 = vector.shape_cast %35 : vector<1x8x32xf32> to vector<8x32xf32>
    %c0_i32_44 = arith.constant 0 : i32
    %c8_i32_45 = arith.constant 8 : i32
    %37 = arith.addi %c0_i32_44, %c8_i32_45 : i32
    %c1_i32_46 = arith.constant 1 : i32
    %38:2 = scf.for %arg15 = %c0_i32_44 to %37 step %c1_i32_46 iter_args(%arg16 = %34, %arg17 = %36) -> (vector<8x32xf32>, vector<8x32xf32>)  : i32 {
      %53 = arith.index_cast %arg15 : i32 to index
      %c0_65 = arith.constant 0 : index
      %c0_66 = arith.constant 0 : index
      %54 = vector.load %arg11[%53, %c0_65, %c0_66] : memref<8x8x128xf32, #tpu.memory_space<vmem>>, vector<1x8x128xf32>
      %55 = vector.shape_cast %54 : vector<1x8x128xf32> to vector<8x128xf32>
      %cst_67 = arith.constant dense<0.000000e+00> : vector<8x128xf32>
      %56 = tpu.matmul %arg16, %25, %cst_67 {dimension_numbers = #tpu.dot_dimension_numbers<[1], [0], [0], [1], [0, 0, 1, 1], [], []>} : vector<8x32xf32>, vector<32x128xf32>, vector<8x128xf32> -> vector<8x128xf32>
      %57 = arith.addf %55, %56 : vector<8x128xf32>
      %58 = vector.extract_strided_slice %57 {offsets = [0, 0], sizes = [8, 96], strides = [1, 1]} : vector<8x128xf32> to vector<8x96xf32>
      %59 = arith.negf %58 : vector<8x96xf32>
      %60 = math.exp %59 : vector<8x96xf32>
      %cst_68 = arith.constant 1.000000e+00 : f32
      %61 = vector.broadcast %cst_68 : f32 to vector<8x96xf32>
      %62 = arith.addf %61, %60 : vector<8x96xf32>
      %63 = arith.divf %61, %62 : vector<8x96xf32>
      %64 = vector.extract_strided_slice %57 {offsets = [0, 96], sizes = [8, 32], strides = [1, 1]} : vector<8x128xf32> to vector<8x32xf32>
      %65 = math.tanh %64 : vector<8x32xf32>
      %66 = vector.extract_strided_slice %63 {offsets = [0, 0], sizes = [8, 32], strides = [1, 1]} : vector<8x96xf32> to vector<8x32xf32>
      %67 = vector.extract_strided_slice %63 {offsets = [0, 32], sizes = [8, 32], strides = [1, 1]} : vector<8x96xf32> to vector<8x32xf32>
      %68 = vector.extract_strided_slice %63 {offsets = [0, 64], sizes = [8, 32], strides = [1, 1]} : vector<8x96xf32> to vector<8x32xf32>
      %69 = arith.mulf %67, %arg17 : vector<8x32xf32>
      %70 = arith.mulf %66, %65 : vector<8x32xf32>
      %71 = arith.addf %69, %70 : vector<8x32xf32>
      %72 = math.tanh %71 : vector<8x32xf32>
      %73 = arith.mulf %68, %72 : vector<8x32xf32>
      %74 = arith.index_cast %arg15 : i32 to index
      %c0_69 = arith.constant 0 : index
      %c0_70 = arith.constant 0 : index
      %75 = vector.load %arg12[%74, %c0_69, %c0_70] : memref<8x8x32xf32, #tpu.memory_space<vmem>>, vector<1x8x32xf32>
      %76 = vector.shape_cast %75 : vector<1x8x32xf32> to vector<8x32xf32>
      %77 = vector.shape_cast %73 : vector<8x32xf32> to vector<1x8x32xf32>
      tpu.vector_store %arg12[%74, %c0_69, %c0_70], %77 {strides = array<i32>} : memref<8x8x32xf32, #tpu.memory_space<vmem>>, vector<1x8x32xf32>,
      scf.yield %73, %71 : vector<8x32xf32>, vector<8x32xf32>
    }
    %c8_i32_47 = arith.constant 8 : i32
    %c1_48 = arith.constant 1 : index
    %c0_49 = arith.constant 0 : index
    %c0_50 = arith.constant 0 : index
    %39 = vector.load %arg13[%c1_48, %c0_49, %c0_50] : memref<2x8x32xf32, #tpu.memory_space<vmem>>, vector<1x8x32xf32>
    %40 = vector.shape_cast %39 : vector<1x8x32xf32> to vector<8x32xf32>
    %41 = vector.shape_cast %38#0 : vector<8x32xf32> to vector<1x8x32xf32>
    tpu.vector_store %arg13[%c1_48, %c0_49, %c0_50], %41 {strides = array<i32>} : memref<2x8x32xf32, #tpu.memory_space<vmem>>, vector<1x8x32xf32>,
    %c1_51 = arith.constant 1 : index
    %c0_52 = arith.constant 0 : index
    %c0_53 = arith.constant 0 : index
    %42 = vector.load %arg14[%c1_51, %c0_52, %c0_53] : memref<2x8x32xf32, #tpu.memory_space<vmem>>, vector<1x8x32xf32>
    %43 = vector.shape_cast %42 : vector<1x8x32xf32> to vector<8x32xf32>
    %44 = vector.shape_cast %38#1 : vector<8x32xf32> to vector<1x8x32xf32>
    tpu.vector_store %arg14[%c1_51, %c0_52, %c0_53], %44 {strides = array<i32>} : memref<2x8x32xf32, #tpu.memory_space<vmem>>, vector<1x8x32xf32>,
    %c0_54 = arith.constant 0 : index
    %c0_55 = arith.constant 0 : index
    %c0_56 = arith.constant 0 : index
    %45 = vector.load %arg12[%c0_54, %c0_55, %c0_56] : memref<8x8x32xf32, #tpu.memory_space<vmem>>, vector<8x8x32xf32>
    %c0_57 = arith.constant 0 : index
    %c0_58 = arith.constant 0 : index
    %46 = vector.load %arg8[%c0_57, %c0_58] : memref<32x3xf32, #tpu.memory_space<vmem>>, vector<32x3xf32>
    %cst_59 = arith.constant dense<0.000000e+00> : vector<8x8x3xf32>
    %47 = tpu.matmul %45, %46, %cst_59 {dimension_numbers = #tpu.dot_dimension_numbers<[2], [0], [0, 1], [1], [0, 0, 0, 1, 1, 1], [], []>} : vector<8x8x32xf32>, vector<32x3xf32>, vector<8x8x3xf32> -> vector<8x8x3xf32>
    %c0_60 = arith.constant 0 : index
    %c0_61 = arith.constant 0 : index
    %48 = vector.load %arg9[%c0_60, %c0_61] : memref<1x3xf32, #tpu.memory_space<vmem>>, vector<1x3xf32>
    %49 = vector.shape_cast %48 : vector<1x3xf32> to vector<1x1x3xf32>
    %50 = vector.broadcast %49 : vector<1x1x3xf32> to vector<8x8x3xf32>
    %51 = arith.addf %47, %50 : vector<8x8x3xf32>
    %c0_62 = arith.constant 0 : index
    %c0_63 = arith.constant 0 : index
    %c0_64 = arith.constant 0 : index
    %52 = vector.load %arg10[%c0_62, %c0_63, %c0_64] : memref<8x8x3xf32, #tpu.memory_space<vmem>>, vector<8x8x3xf32>
    tpu.vector_store %arg10[%c0_62, %c0_63, %c0_64], %51 {strides = array<i32>} : memref<8x8x3xf32, #tpu.memory_space<vmem>>, vector<8x8x3xf32>,
    return
  }
  func.func @transform_0(%arg0: i32) -> (i32, i32, i32) {
    %c0_i32 = arith.constant 0 : i32
    %c0_i32_0 = arith.constant 0 : i32
    %c0_i32_1 = arith.constant 0 : i32
    return %arg0, %c0_i32, %c0_i32_0 : i32, i32, i32
  }
  func.func @transform_1(%arg0: i32) -> (i32, i32) {
    %c0_i32 = arith.constant 0 : i32
    %c0_i32_0 = arith.constant 0 : i32
    %c0_i32_1 = arith.constant 0 : i32
    return %c0_i32, %c0_i32_0 : i32, i32
  }
  func.func @transform_2(%arg0: i32) -> (i32, i32) {
    %c0_i32 = arith.constant 0 : i32
    %c0_i32_0 = arith.constant 0 : i32
    %c0_i32_1 = arith.constant 0 : i32
    return %c0_i32, %c0_i32_0 : i32, i32
  }
  func.func @transform_3(%arg0: i32) -> (i32, i32) {
    %c0_i32 = arith.constant 0 : i32
    %c0_i32_0 = arith.constant 0 : i32
    %c0_i32_1 = arith.constant 0 : i32
    return %c0_i32, %c0_i32_0 : i32, i32
  }
  func.func @transform_4(%arg0: i32) -> (i32, i32) {
    %c0_i32 = arith.constant 0 : i32
    %c0_i32_0 = arith.constant 0 : i32
    %c0_i32_1 = arith.constant 0 : i32
    return %c0_i32, %c0_i32_0 : i32, i32
  }
  func.func @transform_5(%arg0: i32) -> (i32, i32) {
    %c0_i32 = arith.constant 0 : i32
    %c0_i32_0 = arith.constant 0 : i32
    %c0_i32_1 = arith.constant 0 : i32
    return %c0_i32, %c0_i32_0 : i32, i32
  }
  func.func @transform_6(%arg0: i32) -> (i32, i32) {
    %c0_i32 = arith.constant 0 : i32
    %c0_i32_0 = arith.constant 0 : i32
    %c0_i32_1 = arith.constant 0 : i32
    return %c0_i32, %c0_i32_0 : i32, i32
  }
  func.func @transform_7(%arg0: i32) -> (i32, i32) {
    %c0_i32 = arith.constant 0 : i32
    %c0_i32_0 = arith.constant 0 : i32
    %c0_i32_1 = arith.constant 0 : i32
    return %c0_i32, %c0_i32_0 : i32, i32
  }
  func.func @transform_8(%arg0: i32) -> (i32, i32) {
    %c0_i32 = arith.constant 0 : i32
    %c0_i32_0 = arith.constant 0 : i32
    %c0_i32_1 = arith.constant 0 : i32
    return %c0_i32, %c0_i32_0 : i32, i32
  }
  func.func @transform_9(%arg0: i32) -> (i32, i32, i32) {
    %c0_i32 = arith.constant 0 : i32
    %c0_i32_0 = arith.constant 0 : i32
    %c0_i32_1 = arith.constant 0 : i32
    return %arg0, %c0_i32, %c0_i32_0 : i32, i32, i32
  }
}

</mosaic_0001>

<llo_original>
// kernel: generator_forward.1
$region0: #{generator_forward.1}
  #allocation0 [shape = 'u32[]', space=smem, size = 0x4, offset = 0x4, fixed_abs, tag = 'smem constant byte address 0x4 - core index']
  #allocation1 [shape = 'u32[144,128]{1,0:T(1,128)}', space=vmem, size = 0x12000, scoped, tag = 'internal scratch']
  #allocation2 [shape = 'f32[8,8,128]{2,1,0:T(8,128)}', space=vmem, size = 0x8000, scoped, tag = 'scratch operand']
  #allocation3 [shape = 'f32[8,8,32]{2,1,0:T(8,128)}', space=vmem, size = 0x8000, scoped, tag = 'scratch operand']
  #allocation4 [shape = 'f32[2,8,32]{2,1,0:T(8,128)}', space=vmem, size = 0x2000, scoped, tag = 'scratch operand']
  #allocation5 [shape = 'f32[2,8,32]{2,1,0:T(8,128)}', space=vmem, size = 0x2000, scoped, tag = 'scratch operand']
  %s0 = inlined_call_operand.vmem [shape: f32[8,8,4], index: 0, kind: input, shape index: {}]
  %s1 = inlined_call_operand.vmem [shape: f32[4,128], index: 1, kind: input, shape index: {}]
  %s2 = inlined_call_operand.vmem [shape: f32[32,128], index: 2, kind: input, shape index: {}]
  %s3 = inlined_call_operand.vmem [shape: f32[1,128], index: 3, kind: input, shape index: {}]
  %s4 = inlined_call_operand.vmem [shape: f32[32,128], index: 4, kind: input, shape index: {}]
  %s5 = inlined_call_operand.vmem [shape: f32[32,128], index: 5, kind: input, shape index: {}]
  %s6 = inlined_call_operand.vmem [shape: f32[1,128], index: 6, kind: input, shape index: {}]
  %s7 = inlined_call_operand.vmem [shape: f32[32,3], index: 7, kind: input, shape index: {}]
  %s8 = inlined_call_operand.vmem [shape: f32[1,3], index: 8, kind: input, shape index: {}]
  %s9 = inlined_call_operand.vmem [shape: f32[8,8,3], index: 9, kind: output, shape index: {}]
  %s10 = sld [smem:[#allocation0]]
  $region64: #{generator_forward.1} parent=0
    _
  %s12 = ssub.s32 1, %s10
  %s13 = scalar_select 0, %s12, %s10
  // Predicated region
  $region2: #{generator_forward.1} parent=0 // pred_check
    _
  $region3: #{generator_forward.1} parent=0 // pred_check_branch
    %15 = sbr.rel (0) target = $region5
  $region4: #{generator_forward.1} parent=0 // pred_region
    _
  $region5: #{generator_forward.1} parent=0 // pred_fallthru
    _
  // Predicated region
  $region6: #{generator_forward.1} parent=0 // pred_check
    _
  $region7: #{generator_forward.1} parent=0 // pred_check_branch
    %17 = sbr.rel (0) target = $region9
  $region8: #{generator_forward.1} parent=0 // pred_region
    _
  $region9: #{generator_forward.1} parent=0 // pred_fallthru
    _
  // Predicated region
  $region10: #{generator_forward.1} parent=0 // pred_check
    _
  $region11: #{generator_forward.1} parent=0 // pred_check_branch
    %19 = sbr.rel (0) target = $region13
  $region12: #{generator_forward.1} parent=0 // pred_region
    _
  $region13: #{generator_forward.1} parent=0 // pred_fallthru
    _
  // Predicated region
  $region14: #{generator_forward.1} parent=0 // pred_check
    _
  $region15: #{generator_forward.1} parent=0 // pred_check_branch
    %21 = sbr.rel (0) target = $region17
  $region16: #{generator_forward.1} parent=0 // pred_region
    _
  $region17: #{generator_forward.1} parent=0 // pred_fallthru
    _
  // Predicated region
  $region18: #{generator_forward.1} parent=0 // pred_check
    _
  $region19: #{generator_forward.1} parent=0 // pred_check_branch
    %23 = sbr.rel (0) target = $region21
  $region20: #{generator_forward.1} parent=0 // pred_region
    _
  $region21: #{generator_forward.1} parent=0 // pred_fallthru
    _
  // Predicated region
  $region22: #{generator_forward.1} parent=0 // pred_check
    _
  $region23: #{generator_forward.1} parent=0 // pred_check_branch
    %25 = sbr.rel (0) target = $region25
  $region24: #{generator_forward.1} parent=0 // pred_region
    _
  $region25: #{generator_forward.1} parent=0 // pred_fallthru
    _
  // Predicated region
  $region26: #{generator_forward.1} parent=0 // pred_check
    _
  $region27: #{generator_forward.1} parent=0 // pred_check_branch
    %27 = sbr.rel (0) target = $region29
  $region28: #{generator_forward.1} parent=0 // pred_region
    _
  $region29: #{generator_forward.1} parent=0 // pred_fallthru
    _
  // Predicated region
  $region30: #{generator_forward.1} parent=0 // pred_check
    _
  $region31: #{generator_forward.1} parent=0 // pred_check_branch
    %29 = sbr.rel (0) target = $region33
  $region32: #{generator_forward.1} parent=0 // pred_region
    _
  $region33: #{generator_forward.1} parent=0 // pred_fallthru
    _
  // Predicated region
  $region34: #{generator_forward.1} parent=0 // pred_check
    _
  $region35: #{generator_forward.1} parent=0 // pred_check_branch
    %31 = sbr.rel (0) target = $region37
  $region36: #{generator_forward.1} parent=0 // pred_region
    _
  $region37: #{generator_forward.1} parent=0 // pred_fallthru
    _
  %p32 = scmp.eq.s32.totalorder 0, 0
  // Predicated region
  $region38: #{generator_forward.1} parent=0 // pred_check
    %p33 = pneg %p32
  $region39: #{generator_forward.1} parent=0 // pred_check_branch
    %35 = sbr.rel (%p33) target = $region41
  $region40: #{generator_forward.1} parent=0 // pred_region
    %vm36 = vcmask 261120
    %37 = vst.msk [vmem:[#allocation4] sm:$0xff] %vm36, 0.0
    %38 = vst.msk [vmem:[#allocation4 + $0x8] sm:$0xff] %vm36, 0.0
    %39 = vst.msk [vmem:[#allocation5] sm:$0xff] %vm36, 0.0
    %40 = vst.msk [vmem:[#allocation5 + $0x8] sm:$0xff] %vm36, 0.0
  $region41: #{generator_forward.1} parent=0 // pred_fallthru
    _
  %v41 = vld [vmem:[%s1] sm:$0xf]
  %v42 = vld [vmem:[%s2] sm:$0xff]
  %v43 = vld [vmem:[%s2 + $0x8] sm:$0xff]
  %v44 = vld [vmem:[%s2 + $0x10] sm:$0xff]
  %v45 = vld [vmem:[%s2 + $0x18] sm:$0xff]
  %v46 = vld [vmem:[%s3] sm:$0x1]
  %v47 = vld [vmem:[%s0] sm:$0xff]
  %v48 = vld [vmem:[%s0 + $0x8] sm:$0xff]
  %v49 = vld [vmem:[%s0 + $0x10] sm:$0xff]
  %v50 = vld [vmem:[%s0 + $0x18] sm:$0xff]
  %v51 = vld [vmem:[%s0 + $0x20] sm:$0xff]
  %v52 = vld [vmem:[%s0 + $0x28] sm:$0xff]
  %v53 = vld [vmem:[%s0 + $0x30] sm:$0xff]
  %v54 = vld [vmem:[%s0 + $0x38] sm:$0xff]
  %v56 = vlaneseq
  %v57 = vshrl.u32 %v56, 7
  %v58 = vsub.s32 0, %v57
  %v59 = vrot.slane %v46, %v58
  %vm61 = vcmask 31744
  %v63 = vsel %vm61, %v47, 0
  %v66 = vsel %vm61, %v48, 0
  %v69 = vsel %vm61, %v49, 0
  %v72 = vsel %vm61, %v50, 0
  %v75 = vsel %vm61, %v51, 0
  %v78 = vsel %vm61, %v52, 0
  %v81 = vsel %vm61, %v53, 0
  %v84 = vsel %vm61, %v54, 0
  %vm86 = vcmask 1043456
  %v88 = vsel %vm86, %v41, 0
  %90 = vmatprep.subr.mxu0 0.0
  %91 = vmatpush1.msra.mxu0 %v88
  %92 = vmatprep.subr.mxu0 0.0
  %93 = vmatpush1.msra.mxu0 0.0
  %94 = vmatprep.subr.mxu0 0.0
  %95 = vmatpush1.msra.mxu0 0.0
  %96 = vmatprep.subr.mxu0 0.0
  %97 = vmatpush1.msra.mxu0 0.0
  %98 = vmatprep.subr.mxu0 0.0
  %99 = vmatpush1.msra.mxu0 0.0
  %100 = vmatprep.subr.mxu0 0.0
  %101 = vmatpush1.msra.mxu0 0.0
  %102 = vmatprep.subr.mxu0 0.0
  %103 = vmatpush1.msra.mxu0 0.0
  %104 = vmatprep.subr.mxu0 0.0
  %105 = vmatpush1.msra.mxu0 0.0
  %106 = vmatprep.subr.mxu0 0.0
  %107 = vmatpush1.msra.mxu0 0.0
  %108 = vmatprep.subr.mxu0 0.0
  %109 = vmatpush1.msra.mxu0 0.0
  %110 = vmatprep.subr.mxu0 0.0
  %111 = vmatpush1.msra.mxu0 0.0
  %112 = vmatprep.subr.mxu0 0.0
  %113 = vmatpush1.msra.mxu0 0.0
  %114 = vmatprep.subr.mxu0 0.0
  %115 = vmatpush1.msra.mxu0 0.0
  %116 = vmatprep.subr.mxu0 0.0
  %117 = vmatpush1.msra.mxu0 0.0
  %118 = vmatprep.subr.mxu0 0.0
  %119 = vmatpush1.msra.mxu0 0.0
  %120 = vmatprep.subr.mxu0 0.0
  %121 = vmatpush1.msra.mxu0 0.0
  %122 = vmatprep.subr.mxu0 0.0
  %123 = vmatpush1.msra.mxu0 0.0
  %124 = vmatprep.subr.mxu0 0.0
  %125 = vmatpush1.msra.mxu0 0.0
  %126 = vmatprep.subr.mxu0 0.0
  %127 = vmatpush1.msra.mxu0 0.0
  %128 = vmatprep.subr.mxu0 0.0
  %129 = vmatpush1.msra.mxu0 0.0
  %130 = vmatprep.subr.mxu0 0.0
  %131 = vmatpush1.msra.mxu0 0.0
  %132 = vmatprep.subr.mxu0 0.0
  %133 = vmatpush1.msra.mxu0 0.0
  %134 = vmatprep.subr.mxu0 0.0
  %135 = vmatpush1.msra.mxu0 0.0
  %136 = vmatprep.subr.mxu0 0.0
  %137 = vmatpush1.msra.mxu0 0.0
  %138 = vmatprep.subr.mxu0 0.0
  %139 = vmatpush1.msra.mxu0 0.0
  %140 = vmatprep.subr.mxu0 0.0
  %141 = vmatpush1.msra.mxu0 0.0
  %142 = vmatprep.subr.mxu0 0.0
  %143 = vmatpush1.msra.mxu0 0.0
  %144 = vmatprep.subr.mxu0 0.0
  %145 = vmatpush1.msra.mxu0 0.0
  %146 = vmatprep.subr.mxu0 0.0
  %147 = vmatpush1.msra.mxu0 0.0
  %148 = vmatprep.subr.mxu0 0.0
  %149 = vmatpush1.msra.mxu0 0.0
  %150 = vmatprep.subr.mxu0 0.0
  %151 = vmatpush1.msra.mxu0 0.0
  %152 = vmatprep.subr.mxu0 0.0
  %153 = vmatpush1.msra.mxu0 0.0
  %154 = vmatprep.mubr.f32.mxu0 0.0
  %155 = vmatmul.mubr.f32.gmra.mrb[0].mxu0 %v63
  %v156 = vpop.f32.mrb[0].mxu0
  %v157 = vadd.f32 %v59, %v156
  %v158 = vpop.f32.mrb[0].mxu0
  %159 = vmatprep.mubr.f32.mxu0 0.0
  %160 = vmatmul.mubr.f32.gmra.mrb[0].mxu0 %v66
  %v161 = vpop.f32.mrb[0].mxu0
  %v162 = vadd.f32 %v59, %v161
  %v163 = vpop.f32.mrb[0].mxu0
  %164 = vmatprep.mubr.f32.mxu0 0.0
  %165 = vmatmul.mubr.f32.gmra.mrb[0].mxu0 %v69
  %v166 = vpop.f32.mrb[0].mxu0
  %v167 = vadd.f32 %v59, %v166
  %v168 = vpop.f32.mrb[0].mxu0
  %169 = vmatprep.mubr.f32.mxu0 0.0
  %170 = vmatmul.mubr.f32.gmra.mrb[0].mxu0 %v72
  %v171 = vpop.f32.mrb[0].mxu0
  %v172 = vadd.f32 %v59, %v171
  %v173 = vpop.f32.mrb[0].mxu0
  %174 = vmatprep.mubr.f32.mxu0 0.0
  %175 = vmatmul.mubr.f32.gmra.mrb[0].mxu0 %v75
  %v176 = vpop.f32.mrb[0].mxu0
  %v177 = vadd.f32 %v59, %v176
  %v178 = vpop.f32.mrb[0].mxu0
  %179 = vmatprep.mubr.f32.mxu0 0.0
  %180 = vmatmul.mubr.f32.gmra.mrb[0].mxu0 %v78
  %v181 = vpop.f32.mrb[0].mxu0
  %v182 = vadd.f32 %v59, %v181
  %v183 = vpop.f32.mrb[0].mxu0
  %184 = vmatprep.mubr.f32.mxu0 0.0
  %185 = vmatmul.mubr.f32.gmra.mrb[0].mxu0 %v81
  %v186 = vpop.f32.mrb[0].mxu0
  %v187 = vadd.f32 %v59, %v186
  %v188 = vpop.f32.mrb[0].mxu0
  %189 = vmatprep.mubr.f32.mxu0 0.0
  %190 = vmatmul.mubr.f32.gmra.mrb[0].mxu0 %v84
  %v191 = vpop.f32.mrb[0].mxu0
  %v192 = vadd.f32 %v59, %v191
  %v193 = vpop.f32.mrb[0].mxu0
  %194 = vdwg.mxu0
  %195 = vst [vmem:[#allocation2] sm:$0xff] %v157
  %196 = vst [vmem:[#allocation2 + $0x8] sm:$0xff] %v162
  %197 = vst [vmem:[#allocation2 + $0x10] sm:$0xff] %v167
  %198 = vst [vmem:[#allocation2 + $0x18] sm:$0xff] %v172
  %199 = vst [vmem:[#allocation2 + $0x20] sm:$0xff] %v177
  %200 = vst [vmem:[#allocation2 + $0x28] sm:$0xff] %v182
  %201 = vst [vmem:[#allocation2 + $0x30] sm:$0xff] %v187
  %202 = vst [vmem:[#allocation2 + $0x38] sm:$0xff] %v192
  %v203 = vld [vmem:[#allocation4] sm:$0xff]
  %v204 = vld [vmem:[#allocation5] sm:$0xff]
  loop: start=0, step=1, limit=8
  $region42: #{generator_forward.1} parent=0 // loop_pre_header
    _
  $region43: #{generator_forward.1} parent=0 // loop_header
    %s206 = sphi 0, %s210
    %p207 = scmp.ge.s32.totalorder %s206, 8
    %v211 = vphi %v203, %v321
    %v212 = vphi %v204, %v327
  $region44: #{generator_forward.1} parent=0 // loop_header_branch
    %209 = sbr.rel (%p207) target = $region48
  $region45: #{generator_forward.1} parent=0 // loop_body
    %s213 = smul.u32 %s206, 8
    %s214 = scalar_lea.vmem [#allocation2], %s213
    %v215 = vld [vmem:[%s214] sm:$0xff]
    %vm216 = vcmask 261120
    %v218 = vsel %vm216, %v211, 0
    %220 = vmatprep.subr.mxu0 0.0
    %221 = vmatpush1.msra.mxu0 %v42
    %222 = vmatprep.subr.mxu0 0.0
    %223 = vmatpush1.msra.mxu0 %v43
    %224 = vmatprep.subr.mxu0 0.0
    %225 = vmatpush1.msra.mxu0 %v44
    %226 = vmatprep.subr.mxu0 0.0
    %227 = vmatpush1.msra.mxu0 %v45
    %228 = vmatprep.subr.mxu0 0.0
    %229 = vmatpush1.msra.mxu0 0.0
    %230 = vmatprep.subr.mxu0 0.0
    %231 = vmatpush1.msra.mxu0 0.0
    %232 = vmatprep.subr.mxu0 0.0
    %233 = vmatpush1.msra.mxu0 0.0
    %234 = vmatprep.subr.mxu0 0.0
    %235 = vmatpush1.msra.mxu0 0.0
    %236 = vmatprep.subr.mxu0 0.0
    %237 = vmatpush1.msra.mxu0 0.0
    %238 = vmatprep.subr.mxu0 0.0
    %239 = vmatpush1.msra.mxu0 0.0
    %240 = vmatprep.subr.mxu0 0.0
    %241 = vmatpush1.msra.mxu0 0.0
    %242 = vmatprep.subr.mxu0 0.0
    %243 = vmatpush1.msra.mxu0 0.0
    %244 = vmatprep.subr.mxu0 0.0
    %245 = vmatpush1.msra.mxu0 0.0
    %246 = vmatprep.subr.mxu0 0.0
    %247 = vmatpush1.msra.mxu0 0.0
    %248 = vmatprep.subr.mxu0 0.0
    %249 = vmatpush1.msra.mxu0 0.0
    %250 = vmatprep.subr.mxu0 0.0
    %251 = vmatpush1.msra.mxu0 0.0
    %252 = vmatprep.subr.mxu0 0.0
    %253 = vmatpush1.msra.mxu0 0.0
    %254 = vmatprep.subr.mxu0 0.0
    %255 = vmatpush1.msra.mxu0 0.0
    %256 = vmatprep.subr.mxu0 0.0
    %257 = vmatpush1.msra.mxu0 0.0
    %258 = vmatprep.subr.mxu0 0.0
    %259 = vmatpush1.msra.mxu0 0.0
    %260 = vmatprep.subr.mxu0 0.0
    %261 = vmatpush1.msra.mxu0 0.0
    %262 = vmatprep.subr.mxu0 0.0
    %263 = vmatpush1.msra.mxu0 0.0
    %264 = vmatprep.subr.mxu0 0.0
    %265 = vmatpush1.msra.mxu0 0.0
    %266 = vmatprep.subr.mxu0 0.0
    %267 = vmatpush1.msra.mxu0 0.0
    %268 = vmatprep.subr.mxu0 0.0
    %269 = vmatpush1.msra.mxu0 0.0
    %270 = vmatprep.subr.mxu0 0.0
    %271 = vmatpush1.msra.mxu0 0.0
    %272 = vmatprep.subr.mxu0 0.0
    %273 = vmatpush1.msra.mxu0 0.0
    %274 = vmatprep.subr.mxu0 0.0
    %275 = vmatpush1.msra.mxu0 0.0
    %276 = vmatprep.subr.mxu0 0.0
    %277 = vmatpush1.msra.mxu0 0.0
    %278 = vmatprep.subr.mxu0 0.0
    %279 = vmatpush1.msra.mxu0 0.0
    %280 = vmatprep.subr.mxu0 0.0
    %281 = vmatpush1.msra.mxu0 0.0
    %282 = vmatprep.subr.mxu0 0.0
    %283 = vmatpush1.msra.mxu0 0.0
    %284 = vmatprep.mubr.f32.mxu0 0.0
    %285 = vmatmul.mubr.f32.gmra.mrb[0].mxu0 %v218
    %v286 = vpop.f32.mrb[0].mxu0
    %v287 = vadd.f32 0.0, %v286
    %v288 = vpop.f32.mrb[0].mxu0
    %289 = vdwg.mxu0
    %v290 = vadd.f32 %v215, %v287
    %v291 = vxor.u32 %v290, 2147483648
    %v292 = vmul.f32 %v291, 1.442695
    %v293 = vpow.pop %v292
    %v294 = vadd.f32 %v293, 1.0
    %v295 = vrcp.pop %v294
    %v296 = vmul.f32 1.0, %v295
    %v297 = vtanh.pop %v290
    %299 = vrot.lane.b32.xlu0 %v212, 32
    %v300 = vpop.permute.xlu0 %299
    %v302 = vmul.f32 %v296, %v300
    %304 = vrot.lane.b32.xlu0 %v297, 32
    %v305 = vpop.permute.xlu0 %304
    %v307 = vmul.f32 %v296, %v305
    %309 = vrot.lane.b32.xlu0 %v307, 32
    %v310 = vpop.permute.xlu0 %309
    %v312 = vadd.f32 %v302, %v310
    %v313 = vtanh.pop %v312
    %315 = vrot.lane.b32.xlu0 %v313, 32
    %v316 = vpop.permute.xlu0 %315
    %v318 = vmul.f32 %v296, %v316
    %320 = vrot.lane.b32.xlu0 %v318, 64
    %v321 = vpop.permute.xlu0 %320
    %s323 = scalar_lea.vmem [#allocation3], %s213
    %324 = vst.msk [vmem:[%s323] sm:$0xff] %vm216, %v321
    %326 = vrot.lane.b32.xlu0 %v312, 96
    %v327 = vpop.permute.xlu0 %326
  $region46: #{generator_forward.1} parent=0 // loop_footer
    %s210 = sadd.s32 1, %s206
  $region47: #{generator_forward.1} parent=0 // loop_footer_branch
    %205 = sbr.rel target = $region43
  $region48: #{generator_forward.1} parent=0 // loop_exit
    _
  %vm329 = vcmask 261120
  %330 = vst.msk [vmem:[#allocation4] sm:$0xff] %vm329, %v211
  %331 = vst.msk [vmem:[#allocation5] sm:$0xff] %vm329, %v212
  %v332 = vld [vmem:[%s4] sm:$0xff]
  %v333 = vld [vmem:[%s4 + $0x8] sm:$0xff]
  %v334 = vld [vmem:[%s4 + $0x10] sm:$0xff]
  %v335 = vld [vmem:[%s4 + $0x18] sm:$0xff]
  %v336 = vld [vmem:[%s5] sm:$0xff]
  %v337 = vld [vmem:[%s5 + $0x8] sm:$0xff]
  %v338 = vld [vmem:[%s5 + $0x10] sm:$0xff]
  %v339 = vld [vmem:[%s5 + $0x18] sm:$0xff]
  %v340 = vld [vmem:[%s6] sm:$0x1]
  %v341 = vld [vmem:[#allocation3] sm:$0xff]
  %v342 = vld [vmem:[#allocation3 + $0x8] sm:$0xff]
  %v343 = vld [vmem:[#allocation3 + $0x10] sm:$0xff]
  %v344 = vld [vmem:[#allocation3 + $0x18] sm:$0xff]
  %v345 = vld [vmem:[#allocation3 + $0x20] sm:$0xff]
  %v346 = vld [vmem:[#allocation3 + $0x28] sm:$0xff]
  %v347 = vld [vmem:[#allocation3 + $0x30] sm:$0xff]
  %v348 = vld [vmem:[#allocation3 + $0x38] sm:$0xff]
  %v350 = vlaneseq
  %v351 = vshrl.u32 %v350, 7
  %v352 = vsub.s32 0, %v351
  %v353 = vrot.slane %v340, %v352
  %v356 = vsel %vm329, %v341, 0
  %v359 = vsel %vm329, %v342, 0
  %v362 = vsel %vm329, %v343, 0
  %v365 = vsel %vm329, %v344, 0
  %v368 = vsel %vm329, %v345, 0
  %v371 = vsel %vm329, %v346, 0
  %v374 = vsel %vm329, %v347, 0
  %v377 = vsel %vm329, %v348, 0
  %379 = vmatprep.subr.mxu0 0.0
  %380 = vmatpush1.msra.mxu0 %v332
  %381 = vmatprep.subr.mxu0 0.0
  %382 = vmatpush1.msra.mxu0 %v333
  %383 = vmatprep.subr.mxu0 0.0
  %384 = vmatpush1.msra.mxu0 %v334
  %385 = vmatprep.subr.mxu0 0.0
  %386 = vmatpush1.msra.mxu0 %v335
  %387 = vmatprep.subr.mxu0 0.0
  %388 = vmatpush1.msra.mxu0 0.0
  %389 = vmatprep.subr.mxu0 0.0
  %390 = vmatpush1.msra.mxu0 0.0
  %391 = vmatprep.subr.mxu0 0.0
  %392 = vmatpush1.msra.mxu0 0.0
  %393 = vmatprep.subr.mxu0 0.0
  %394 = vmatpush1.msra.mxu0 0.0
  %395 = vmatprep.subr.mxu0 0.0
  %396 = vmatpush1.msra.mxu0 0.0
  %397 = vmatprep.subr.mxu0 0.0
  %398 = vmatpush1.msra.mxu0 0.0
  %399 = vmatprep.subr.mxu0 0.0
  %400 = vmatpush1.msra.mxu0 0.0
  %401 = vmatprep.subr.mxu0 0.0
  %402 = vmatpush1.msra.mxu0 0.0
  %403 = vmatprep.subr.mxu0 0.0
  %404 = vmatpush1.msra.mxu0 0.0
  %405 = vmatprep.subr.mxu0 0.0
  %406 = vmatpush1.msra.mxu0 0.0
  %407 = vmatprep.subr.mxu0 0.0
  %408 = vmatpush1.msra.mxu0 0.0
  %409 = vmatprep.subr.mxu0 0.0
  %410 = vmatpush1.msra.mxu0 0.0
  %411 = vmatprep.subr.mxu0 0.0
  %412 = vmatpush1.msra.mxu0 0.0
  %413 = vmatprep.subr.mxu0 0.0
  %414 = vmatpush1.msra.mxu0 0.0
  %415 = vmatprep.subr.mxu0 0.0
  %416 = vmatpush1.msra.mxu0 0.0
  %417 = vmatprep.subr.mxu0 0.0
  %418 = vmatpush1.msra.mxu0 0.0
  %419 = vmatprep.subr.mxu0 0.0
  %420 = vmatpush1.msra.mxu0 0.0
  %421 = vmatprep.subr.mxu0 0.0
  %422 = vmatpush1.msra.mxu0 0.0
  %423 = vmatprep.subr.mxu0 0.0
  %424 = vmatpush1.msra.mxu0 0.0
  %425 = vmatprep.subr.mxu0 0.0
  %426 = vmatpush1.msra.mxu0 0.0
  %427 = vmatprep.subr.mxu0 0.0
  %428 = vmatpush1.msra.mxu0 0.0
  %429 = vmatprep.subr.mxu0 0.0
  %430 = vmatpush1.msra.mxu0 0.0
  %431 = vmatprep.subr.mxu0 0.0
  %432 = vmatpush1.msra.mxu0 0.0
  %433 = vmatprep.subr.mxu0 0.0
  %434 = vmatpush1.msra.mxu0 0.0
  %435 = vmatprep.subr.mxu0 0.0
  %436 = vmatpush1.msra.mxu0 0.0
  %437 = vmatprep.subr.mxu0 0.0
  %438 = vmatpush1.msra.mxu0 0.0
  %439 = vmatprep.subr.mxu0 0.0
  %440 = vmatpush1.msra.mxu0 0.0
  %441 = vmatprep.subr.mxu0 0.0
  %442 = vmatpush1.msra.mxu0 0.0
  %443 = vmatprep.mubr.f32.mxu0 0.0
  %444 = vmatmul.mubr.f32.gmra.mrb[0].mxu0 %v356
  %v445 = vpop.f32.mrb[0].mxu0
  %v446 = vadd.f32 %v353, %v445
  %v447 = vpop.f32.mrb[0].mxu0
  %448 = vmatprep.mubr.f32.mxu0 0.0
  %449 = vmatmul.mubr.f32.gmra.mrb[0].mxu0 %v359
  %v450 = vpop.f32.mrb[0].mxu0
  %v451 = vadd.f32 %v353, %v450
  %v452 = vpop.f32.mrb[0].mxu0
  %453 = vmatprep.mubr.f32.mxu0 0.0
  %454 = vmatmul.mubr.f32.gmra.mrb[0].mxu0 %v362
  %v455 = vpop.f32.mrb[0].mxu0
  %v456 = vadd.f32 %v353, %v455
  %v457 = vpop.f32.mrb[0].mxu0
  %458 = vmatprep.mubr.f32.mxu0 0.0
  %459 = vmatmul.mubr.f32.gmra.mrb[0].mxu0 %v365
  %v460 = vpop.f32.mrb[0].mxu0
  %v461 = vadd.f32 %v353, %v460
  %v462 = vpop.f32.mrb[0].mxu0
  %463 = vmatprep.mubr.f32.mxu0 0.0
  %464 = vmatmul.mubr.f32.gmra.mrb[0].mxu0 %v368
  %v465 = vpop.f32.mrb[0].mxu0
  %v466 = vadd.f32 %v353, %v465
  %v467 = vpop.f32.mrb[0].mxu0
  %468 = vmatprep.mubr.f32.mxu0 0.0
  %469 = vmatmul.mubr.f32.gmra.mrb[0].mxu0 %v371
  %v470 = vpop.f32.mrb[0].mxu0
  %v471 = vadd.f32 %v353, %v470
  %v472 = vpop.f32.mrb[0].mxu0
  %473 = vmatprep.mubr.f32.mxu0 0.0
  %474 = vmatmul.mubr.f32.gmra.mrb[0].mxu0 %v374
  %v475 = vpop.f32.mrb[0].mxu0
  %v476 = vadd.f32 %v353, %v475
  %v477 = vpop.f32.mrb[0].mxu0
  %478 = vmatprep.mubr.f32.mxu0 0.0
  %479 = vmatmul.mubr.f32.gmra.mrb[0].mxu0 %v377
  %v480 = vpop.f32.mrb[0].mxu0
  %v481 = vadd.f32 %v353, %v480
  %v482 = vpop.f32.mrb[0].mxu0
  %483 = vdwg.mxu0
  %484 = vst [vmem:[#allocation2] sm:$0xff] %v446
  %485 = vst [vmem:[#allocation2 + $0x8] sm:$0xff] %v451
  %486 = vst [vmem:[#allocation2 + $0x10] sm:$0xff] %v456
  %487 = vst [vmem:[#allocation2 + $0x18] sm:$0xff] %v461
  %488 = vst [vmem:[#allocation2 + $0x20] sm:$0xff] %v466
  %489 = vst [vmem:[#allocation2 + $0x28] sm:$0xff] %v471
  %490 = vst [vmem:[#allocation2 + $0x30] sm:$0xff] %v476
  %491 = vst [vmem:[#allocation2 + $0x38] sm:$0xff] %v481
  %s492 = scalar_lea.vmem [#allocation4], 8
  %v493 = vld [vmem:[%s492] sm:$0xff]
  %s494 = scalar_lea.vmem [#allocation5], 8
  %v495 = vld [vmem:[%s494] sm:$0xff]
  loop: start=0, step=1, limit=8
  $region49: #{generator_forward.1} parent=0 // loop_pre_header
    _
  $region50: #{generator_forward.1} parent=0 // loop_header
    %s497 = sphi 0, %s501
    %p498 = scmp.ge.s32.totalorder %s497, 8
    %v502 = vphi %v493, %v611
    %v503 = vphi %v495, %v617
  $region51: #{generator_forward.1} parent=0 // loop_header_branch
    %500 = sbr.rel (%p498) target = $region55
  $region52: #{generator_forward.1} parent=0 // loop_body
    %s504 = smul.u32 %s497, 8
    %s505 = scalar_lea.vmem [#allocation2], %s504
    %v506 = vld [vmem:[%s505] sm:$0xff]
    %v508 = vsel %vm329, %v502, 0
    %510 = vmatprep.subr.mxu0 0.0
    %511 = vmatpush1.msra.mxu0 %v336
    %512 = vmatprep.subr.mxu0 0.0
    %513 = vmatpush1.msra.mxu0 %v337
    %514 = vmatprep.subr.mxu0 0.0
    %515 = vmatpush1.msra.mxu0 %v338
    %516 = vmatprep.subr.mxu0 0.0
    %517 = vmatpush1.msra.mxu0 %v339
    %518 = vmatprep.subr.mxu0 0.0
    %519 = vmatpush1.msra.mxu0 0.0
    %520 = vmatprep.subr.mxu0 0.0
    %521 = vmatpush1.msra.mxu0 0.0
    %522 = vmatprep.subr.mxu0 0.0
    %523 = vmatpush1.msra.mxu0 0.0
    %524 = vmatprep.subr.mxu0 0.0
    %525 = vmatpush1.msra.mxu0 0.0
    %526 = vmatprep.subr.mxu0 0.0
    %527 = vmatpush1.msra.mxu0 0.0
    %528 = vmatprep.subr.mxu0 0.0
    %529 = vmatpush1.msra.mxu0 0.0
    %530 = vmatprep.subr.mxu0 0.0
    %531 = vmatpush1.msra.mxu0 0.0
    %532 = vmatprep.subr.mxu0 0.0
    %533 = vmatpush1.msra.mxu0 0.0
    %534 = vmatprep.subr.mxu0 0.0
    %535 = vmatpush1.msra.mxu0 0.0
    %536 = vmatprep.subr.mxu0 0.0
    %537 = vmatpush1.msra.mxu0 0.0
    %538 = vmatprep.subr.mxu0 0.0
    %539 = vmatpush1.msra.mxu0 0.0
    %540 = vmatprep.subr.mxu0 0.0
    %541 = vmatpush1.msra.mxu0 0.0
    %542 = vmatprep.subr.mxu0 0.0
    %543 = vmatpush1.msra.mxu0 0.0
    %544 = vmatprep.subr.mxu0 0.0
    %545 = vmatpush1.msra.mxu0 0.0
    %546 = vmatprep.subr.mxu0 0.0
    %547 = vmatpush1.msra.mxu0 0.0
    %548 = vmatprep.subr.mxu0 0.0
    %549 = vmatpush1.msra.mxu0 0.0
    %550 = vmatprep.subr.mxu0 0.0
    %551 = vmatpush1.msra.mxu0 0.0
    %552 = vmatprep.subr.mxu0 0.0
    %553 = vmatpush1.msra.mxu0 0.0
    %554 = vmatprep.subr.mxu0 0.0
    %555 = vmatpush1.msra.mxu0 0.0
    %556 = vmatprep.subr.mxu0 0.0
    %557 = vmatpush1.msra.mxu0 0.0
    %558 = vmatprep.subr.mxu0 0.0
    %559 = vmatpush1.msra.mxu0 0.0
    %560 = vmatprep.subr.mxu0 0.0
    %561 = vmatpush1.msra.mxu0 0.0
    %562 = vmatprep.subr.mxu0 0.0
    %563 = vmatpush1.msra.mxu0 0.0
    %564 = vmatprep.subr.mxu0 0.0
    %565 = vmatpush1.msra.mxu0 0.0
    %566 = vmatprep.subr.mxu0 0.0
    %567 = vmatpush1.msra.mxu0 0.0
    %568 = vmatprep.subr.mxu0 0.0
    %569 = vmatpush1.msra.mxu0 0.0
    %570 = vmatprep.subr.mxu0 0.0
    %571 = vmatpush1.msra.mxu0 0.0
    %572 = vmatprep.subr.mxu0 0.0
    %573 = vmatpush1.msra.mxu0 0.0
    %574 = vmatprep.mubr.f32.mxu0 0.0
    %575 = vmatmul.mubr.f32.gmra.mrb[0].mxu0 %v508
    %v576 = vpop.f32.mrb[0].mxu0
    %v577 = vadd.f32 0.0, %v576
    %v578 = vpop.f32.mrb[0].mxu0
    %579 = vdwg.mxu0
    %v580 = vadd.f32 %v506, %v577
    %v581 = vxor.u32 %v580, 2147483648
    %v582 = vmul.f32 %v581, 1.442695
    %v583 = vpow.pop %v582
    %v584 = vadd.f32 %v583, 1.0
    %v585 = vrcp.pop %v584
    %v586 = vmul.f32 1.0, %v585
    %v587 = vtanh.pop %v580
    %589 = vrot.lane.b32.xlu0 %v503, 32
    %v590 = vpop.permute.xlu0 %589
    %v592 = vmul.f32 %v586, %v590
    %594 = vrot.lane.b32.xlu0 %v587, 32
    %v595 = vpop.permute.xlu0 %594
    %v597 = vmul.f32 %v586, %v595
    %599 = vrot.lane.b32.xlu0 %v597, 32
    %v600 = vpop.permute.xlu0 %599
    %v602 = vadd.f32 %v592, %v600
    %v603 = vtanh.pop %v602
    %605 = vrot.lane.b32.xlu0 %v603, 32
    %v606 = vpop.permute.xlu0 %605
    %v608 = vmul.f32 %v586, %v606
    %610 = vrot.lane.b32.xlu0 %v608, 64
    %v611 = vpop.permute.xlu0 %610
    %s613 = scalar_lea.vmem [#allocation3], %s504
    %614 = vst.msk [vmem:[%s613] sm:$0xff] %vm329, %v611
    %616 = vrot.lane.b32.xlu0 %v602, 96
    %v617 = vpop.permute.xlu0 %616
  $region53: #{generator_forward.1} parent=0 // loop_footer
    %s501 = sadd.s32 1, %s497
  $region54: #{generator_forward.1} parent=0 // loop_footer_branch
    %496 = sbr.rel target = $region50
  $region55: #{generator_forward.1} parent=0 // loop_exit
    _
  %619 = vst.msk [vmem:[%s492] sm:$0xff] %vm329, %v502
  %620 = vst.msk [vmem:[%s494] sm:$0xff] %vm329, %v503
  %v621 = vld [vmem:[#allocation3] sm:$0xff]
  %v622 = vld [vmem:[#allocation3 + $0x8] sm:$0xff]
  %v623 = vld [vmem:[#allocation3 + $0x10] sm:$0xff]
  %v624 = vld [vmem:[#allocation3 + $0x18] sm:$0xff]
  %v625 = vld [vmem:[#allocation3 + $0x20] sm:$0xff]
  %v626 = vld [vmem:[#allocation3 + $0x28] sm:$0xff]
  %v627 = vld [vmem:[#allocation3 + $0x30] sm:$0xff]
  %v628 = vld [vmem:[#allocation3 + $0x38] sm:$0xff]
  %v629 = vld [vmem:[%s7] sm:$0xff]
  %v630 = vld [vmem:[%s7 + $0x8] sm:$0xff]
  %v631 = vld [vmem:[%s7 + $0x10] sm:$0xff]
  %v632 = vld [vmem:[%s7 + $0x18] sm:$0xff]
  %v633 = vld [vmem:[%s8] sm:$0x1]
  %v635 = vlaneseq
  %v636 = vshrl.u32 %v635, 7
  %v637 = vsub.s32 0, %v636
  %v638 = vrot.slane %v633, %v637
  %v641 = vsel %vm329, %v621, 0
  %v644 = vsel %vm329, %v622, 0
  %v647 = vsel %vm329, %v623, 0
  %v650 = vsel %vm329, %v624, 0
  %v653 = vsel %vm329, %v625, 0
  %v656 = vsel %vm329, %v626, 0
  %v659 = vsel %vm329, %v627, 0
  %v662 = vsel %vm329, %v628, 0
  %664 = vmatprep.subr.mxu0 0.0
  %665 = vmatpush1.msra.mxu0 %v629
  %666 = vmatprep.subr.mxu0 0.0
  %667 = vmatpush1.msra.mxu0 %v630
  %668 = vmatprep.subr.mxu0 0.0
  %669 = vmatpush1.msra.mxu0 %v631
  %670 = vmatprep.subr.mxu0 0.0
  %671 = vmatpush1.msra.mxu0 %v632
  %672 = vmatprep.subr.mxu0 0.0
  %673 = vmatpush1.msra.mxu0 0.0
  %674 = vmatprep.subr.mxu0 0.0
  %675 = vmatpush1.msra.mxu0 0.0
  %676 = vmatprep.subr.mxu0 0.0
  %677 = vmatpush1.msra.mxu0 0.0
  %678 = vmatprep.subr.mxu0 0.0
  %679 = vmatpush1.msra.mxu0 0.0
  %680 = vmatprep.subr.mxu0 0.0
  %681 = vmatpush1.msra.mxu0 0.0
  %682 = vmatprep.subr.mxu0 0.0
  %683 = vmatpush1.msra.mxu0 0.0
  %684 = vmatprep.subr.mxu0 0.0
  %685 = vmatpush1.msra.mxu0 0.0
  %686 = vmatprep.subr.mxu0 0.0
  %687 = vmatpush1.msra.mxu0 0.0
  %688 = vmatprep.subr.mxu0 0.0
  %689 = vmatpush1.msra.mxu0 0.0
  %690 = vmatprep.subr.mxu0 0.0
  %691 = vmatpush1.msra.mxu0 0.0
  %692 = vmatprep.subr.mxu0 0.0
  %693 = vmatpush1.msra.mxu0 0.0
  %694 = vmatprep.subr.mxu0 0.0
  %695 = vmatpush1.msra.mxu0 0.0
  %696 = vmatprep.subr.mxu0 0.0
  %697 = vmatpush1.msra.mxu0 0.0
  %698 = vmatprep.subr.mxu0 0.0
  %699 = vmatpush1.msra.mxu0 0.0
  %700 = vmatprep.subr.mxu0 0.0
  %701 = vmatpush1.msra.mxu0 0.0
  %702 = vmatprep.subr.mxu0 0.0
  %703 = vmatpush1.msra.mxu0 0.0
  %704 = vmatprep.subr.mxu0 0.0
  %705 = vmatpush1.msra.mxu0 0.0
  %706 = vmatprep.subr.mxu0 0.0
  %707 = vmatpush1.msra.mxu0 0.0
  %708 = vmatprep.subr.mxu0 0.0
  %709 = vmatpush1.msra.mxu0 0.0
  %710 = vmatprep.subr.mxu0 0.0
  %711 = vmatpush1.msra.mxu0 0.0
  %712 = vmatprep.subr.mxu0 0.0
  %713 = vmatpush1.msra.mxu0 0.0
  %714 = vmatprep.subr.mxu0 0.0
  %715 = vmatpush1.msra.mxu0 0.0
  %716 = vmatprep.subr.mxu0 0.0
  %717 = vmatpush1.msra.mxu0 0.0
  %718 = vmatprep.subr.mxu0 0.0
  %719 = vmatpush1.msra.mxu0 0.0
  %720 = vmatprep.subr.mxu0 0.0
  %721 = vmatpush1.msra.mxu0 0.0
  %722 = vmatprep.subr.mxu0 0.0
  %723 = vmatpush1.msra.mxu0 0.0
  %724 = vmatprep.subr.mxu0 0.0
  %725 = vmatpush1.msra.mxu0 0.0
  %726 = vmatprep.subr.mxu0 0.0
  %727 = vmatpush1.msra.mxu0 0.0
  %728 = vmatprep.mubr.f32.mxu0 0.0
  %729 = vmatmul.mubr.f32.gmra.mrb[0].mxu0 %v641
  %v730 = vpop.f32.mrb[0].mxu0
  %v731 = vadd.f32 %v638, %v730
  %v732 = vpop.f32.mrb[0].mxu0
  %733 = vmatprep.mubr.f32.mxu0 0.0
  %734 = vmatmul.mubr.f32.gmra.mrb[0].mxu0 %v644
  %v735 = vpop.f32.mrb[0].mxu0
  %v736 = vadd.f32 %v638, %v735
  %v737 = vpop.f32.mrb[0].mxu0
  %738 = vmatprep.mubr.f32.mxu0 0.0
  %739 = vmatmul.mubr.f32.gmra.mrb[0].mxu0 %v647
  %v740 = vpop.f32.mrb[0].mxu0
  %v741 = vadd.f32 %v638, %v740
  %v742 = vpop.f32.mrb[0].mxu0
  %743 = vmatprep.mubr.f32.mxu0 0.0
  %744 = vmatmul.mubr.f32.gmra.mrb[0].mxu0 %v650
  %v745 = vpop.f32.mrb[0].mxu0
  %v746 = vadd.f32 %v638, %v745
  %v747 = vpop.f32.mrb[0].mxu0
  %748 = vmatprep.mubr.f32.mxu0 0.0
  %749 = vmatmul.mubr.f32.gmra.mrb[0].mxu0 %v653
  %v750 = vpop.f32.mrb[0].mxu0
  %v751 = vadd.f32 %v638, %v750
  %v752 = vpop.f32.mrb[0].mxu0
  %753 = vmatprep.mubr.f32.mxu0 0.0
  %754 = vmatmul.mubr.f32.gmra.mrb[0].mxu0 %v656
  %v755 = vpop.f32.mrb[0].mxu0
  %v756 = vadd.f32 %v638, %v755
  %v757 = vpop.f32.mrb[0].mxu0
  %758 = vmatprep.mubr.f32.mxu0 0.0
  %759 = vmatmul.mubr.f32.gmra.mrb[0].mxu0 %v659
  %v760 = vpop.f32.mrb[0].mxu0
  %v761 = vadd.f32 %v638, %v760
  %v762 = vpop.f32.mrb[0].mxu0
  %763 = vmatprep.mubr.f32.mxu0 0.0
  %764 = vmatmul.mubr.f32.gmra.mrb[0].mxu0 %v662
  %v765 = vpop.f32.mrb[0].mxu0
  %v766 = vadd.f32 %v638, %v765
  %v767 = vpop.f32.mrb[0].mxu0
  %768 = vdwg.mxu0
  %vm769 = vcmask 23552
  %770 = vst.msk [vmem:[%s9] sm:$0xff] %vm769, %v731
  %771 = vst.msk [vmem:[%s9 + $0x8] sm:$0xff] %vm769, %v736
  %772 = vst.msk [vmem:[%s9 + $0x10] sm:$0xff] %vm769, %v741
  %773 = vst.msk [vmem:[%s9 + $0x18] sm:$0xff] %vm769, %v746
  %774 = vst.msk [vmem:[%s9 + $0x20] sm:$0xff] %vm769, %v751
  %775 = vst.msk [vmem:[%s9 + $0x28] sm:$0xff] %vm769, %v756
  %776 = vst.msk [vmem:[%s9 + $0x30] sm:$0xff] %vm769, %v761
  %777 = vst.msk [vmem:[%s9 + $0x38] sm:$0xff] %vm769, %v766
  // Predicated region
  $region56: #{generator_forward.1} parent=0 // pred_check
    _
  $region57: #{generator_forward.1} parent=0 // pred_check_branch
    %779 = sbr.rel (0) target = $region59
  $region58: #{generator_forward.1} parent=0 // pred_region
    _
  $region59: #{generator_forward.1} parent=0 // pred_fallthru
    _
  // Predicated region
  $region60: #{generator_forward.1} parent=0 // pred_check
    _
  $region61: #{generator_forward.1} parent=0 // pred_check_branch
    %781 = sbr.rel (0) target = $region63
  $region62: #{generator_forward.1} parent=0 // pred_region
    _
  $region63: #{generator_forward.1} parent=0 // pred_fallthru
    _

</llo_original>
